<compile_context>
chip_gen: v5e
topology: v5e:2x2
jax: 0.10.0
libtpu: 0.0.40
codegen_flags: <defaults>
</compile_context>

<pallas_src>
import functools

import jax
import jax.numpy as jnp
import numpy as np
from jax.experimental import pallas as pl
from jax.experimental.pallas import tpu as pltpu


def _round_up(x, m):
    return (x + m - 1) // m * m


# ---------------------------------------------------------------------------
# Kernels
# ---------------------------------------------------------------------------

def _causal_conv1d_kernel(x_ref, w_ref, b_ref, o_ref, win_ref, col_ref, *,
                          kernel_size, dilation, pad, pad_up, t_tile,
                          c_in, c8, multi_tile):
    # x_ref:   (C_in, t_tile)          current (unpadded) input time tile
    # w_ref:   (C_out, K*c8)           tap-stacked weights; rows j*c8+C_in .. (j+1)*c8
    #                                  are zero (sublane-alignment padding)
    # b_ref:   (C_out, 1)              bias
    # o_ref:   (C_out, t_tile)         output tile (time stays on lanes)
    # win_ref: (C_in, pad_up+t_tile)   persistent window: cols [pad_up-pad, pad_up)
    #                                  hold the causal left halo, [pad_up, ...) the
    #                                  current tile.  pad_up = round_up(pad, 128)
    #                                  keeps the big per-step tile store lane-aligned.
    # col_ref: (K*c8, t_tile)          im2col slab fed to one MXU matmul.
    t = pl.program_id(1)
    pad_off = pad_up - pad

    @pl.when(t == 0)
    def _init():
        # New batch row: zero the causal halo; (re)zero col so its sublane-padding
        # rows never hold garbage (they multiply zero weight rows anyway, but
        # 0 * NaN would still poison the accumulator).
        win_ref[:, :pad_up] = jnp.zeros((c_in, pad_up), win_ref.dtype)
        if c8 != c_in:
            col_ref[...] = jnp.zeros_like(col_ref)

    # Write the fresh tile into the tail of the persistent window, in place and
    # lane-aligned (replaces the old carry + jnp.concatenate copy).
    win_ref[:, pl.ds(pad_up, t_tile)] = x_ref[...]

    # im2col: each dilated tap lands at an 8-aligned sublane offset of col
    # (replaces the old axis-0 concatenate / cross-sublane repack).
    for j in range(kernel_size):
        tap = win_ref[:, pl.ds(pad_off + j * dilation, t_tile)]
        col_ref[pl.ds(j * c8, c_in), :] = tap.astype(col_ref.dtype)

    # One fused MXU matmul over the whole receptive field: (C_out,K*c8)@(K*c8,T_t).
    acc = jnp.dot(w_ref[...], col_ref[...], preferred_element_type=jnp.float32)
    o_ref[...] = (acc + b_ref[...].astype(jnp.float32)).astype(o_ref.dtype)

    if multi_tile:
        # Rolling halo: the next tile's left context is the last `pad` columns of
        # this window.  Also correct when pad > t_tile (deep dilation layers).
        @pl.when(t + 1 < pl.num_programs(1))
        def _carry():
            tail = win_ref[:, pl.ds(pad_off + t_tile, pad)]
            win_ref[:, pl.ds(pad_off, pad)] = tail


def _pointwise_conv1d_kernel(x_ref, w_ref, b_ref, o_ref, *, mxu_dtype):
    # K == 1 (pad == 0): plain channel-mixing matmul; every tile independent.
    acc = jnp.dot(w_ref[...], x_ref[...].astype(mxu_dtype),
                  preferred_element_type=jnp.float32)
    o_ref[...] = (acc + b_ref[...].astype(jnp.float32)).astype(o_ref.dtype)


# ---------------------------------------------------------------------------
# Tiling policy / VMEM budgeting
# ---------------------------------------------------------------------------

def _vmem_estimate(C_in, C_out, K, pad, t_tile, in_itemsize, mxu_itemsize):
    ci = _round_up(C_in, 8)
    co = _round_up(C_out, 8)
    tl = _round_up(t_tile, 128)
    pad_up = _round_up(pad, 128) if pad > 0 else 0
    est = 2 * ci * tl * in_itemsize                           # x tile, double buffered
    est += 2 * co * tl * in_itemsize                          # y tile, double buffered
    est += ci * (pad_up + tl) * in_itemsize                   # window scratch
    est += _round_up(K * ci, 8) * tl * mxu_itemsize           # im2col scratch
    est += 2 * co * _round_up(max(K * ci, 1), 128) * mxu_itemsize  # weights
    est += 2 * co * 128 * 4                                   # bias (lane padded)
    return est


def _pick_t_tile(T, C_in, C_out, K, pad, in_itemsize, mxu_itemsize,
                 budget=24 * 1024 * 1024):
    # Largest lane-aligned time tile whose double-buffered footprint fits every
    # generation's scoped VMEM (v7x: 64 MiB physical / 32 MiB scoped default).
    if T <= 128:
        return T                      # full-extent block on the short last dim
    t_cap = _round_up(T, 128)
    for cand in (2048, 1024, 512, 256, 128):
        if cand > t_cap:
            continue
        if _vmem_estimate(C_in, C_out, K, pad, cand,
                          in_itemsize, mxu_itemsize) <= budget:
            return cand
    return 128


# ---------------------------------------------------------------------------
# Wrapper
# ---------------------------------------------------------------------------

def causal_conv1d(x, weight, bias, dilation=1, *, mxu_dtype=None, t_tile=None):
    """Causal dilated conv1d matching WaveNet's CausalConv1d.forward.

    x: (B, C_in, T), weight: (C_out, C_in, K) [nn.Conv1d layout], bias: (C_out,).
    Returns (B, C_out, T).  `mxu_dtype` sets the MXU operand dtype (defaults to
    x.dtype); pass jnp.bfloat16 on v6e/v7x to run fp32 activations at MXU rate.
    """
    B, C_in, T = x.shape
    C_out, _, K = weight.shape
    pad = (K - 1) * dilation
    if mxu_dtype is None:
        mxu_dtype = x.dtype
    in_itemsize = np.dtype(x.dtype).itemsize
    mxu_itemsize = np.dtype(mxu_dtype).itemsize

    if t_tile is None:
        t_tile = _pick_t_tile(T, C_in, C_out, K, pad, in_itemsize, mxu_itemsize)
    n_t = pl.cdiv(T, t_tile)
    multi_tile = n_t > 1

    vmem_est = _vmem_estimate(C_in, C_out, K, pad, t_tile, in_itemsize, mxu_itemsize)
    vmem_limit = int(min(128 * 1024 * 1024, max(32 * 1024 * 1024, 2 * vmem_est)))

    b2 = bias.reshape(C_out, 1)

    cost = pl.CostEstimate(
        flops=2 * B * C_out * T * K * C_in,
        transcendentals=0,
        bytes_accessed=(B * C_in * T + B * C_out * T) * in_itemsize
        + (C_out * K * C_in + C_out) * mxu_itemsize,
    )

    # TODO(synk): for tiny grids (e.g. B=2, T=16) fold several batch rows per
    # grid step (einsum 'ok,bkt->bot') to amortize the ~0.35 us per-step cost.

    if pad == 0:
        # K == 1: pointwise conv; no halo, so both grid axes are parallel.
        w_flat = weight.reshape(C_out, C_in).astype(mxu_dtype)
        kern = functools.partial(_pointwise_conv1d_kernel, mxu_dtype=mxu_dtype)
        return pl.pallas_call(
            kern,
            out_shape=jax.ShapeDtypeStruct((B, C_out, T), x.dtype),
            grid=(B, n_t),
            in_specs=[
                pl.BlockSpec((None, C_in, t_tile), lambda b, t: (b, 0, t)),
                pl.BlockSpec((C_out, C_in), lambda b, t: (0, 0)),
                pl.BlockSpec((C_out, 1), lambda b, t: (0, 0)),
            ],
            out_specs=pl.BlockSpec((None, C_out, t_tile), lambda b, t: (b, 0, t)),
            compiler_params=pltpu.CompilerParams(
                dimension_semantics=("parallel", "parallel"),
                vmem_limit_bytes=vmem_limit),
            cost_estimate=cost,
        )(x, w_flat, b2)

    # General dilated path.
    c8 = _round_up(C_in, 8)
    pad_up = _round_up(pad, 128)

    # Tap-stacked, sublane-padded weights: w_flat[o, j*c8 + c] = weight[o, c, j]
    # for c < C_in, zero otherwise (matches the zero rows of the im2col slab).
    w_t = jnp.transpose(weight, (0, 2, 1))                     # (C_out, K, C_in)
    w_t = jnp.pad(w_t, ((0, 0), (0, 0), (0, c8 - C_in)))       # (C_out, K, c8)
    w_flat = w_t.reshape(C_out, K * c8).astype(mxu_dtype)

    kern = functools.partial(
        _causal_conv1d_kernel, kernel_size=K, dilation=dilation, pad=pad,
        pad_up=pad_up, t_tile=t_tile, c_in=C_in, c8=c8, multi_tile=multi_tile)

    # TODO(synk): on v7x, optionally re-read the pad-column halo from HBM per
    # tile (dropping the carry scratch) so the time axis can also be "parallel"
    # across both TensorCores when B is small or odd.
    return pl.pallas_call(
        kern,
        out_shape=jax.ShapeDtypeStruct((B, C_out, T), x.dtype),
        grid=(B, n_t),
        in_specs=[
            pl.BlockSpec((None, C_in, t_tile), lambda b, t: (b, 0, t)),
            pl.BlockSpec((C_out, K * c8), lambda b, t: (0, 0)),
            pl.BlockSpec((C_out, 1), lambda b, t: (0, 0)),
        ],
        out_specs=pl.BlockSpec((None, C_out, t_tile), lambda b, t: (b, 0, t)),
        scratch_shapes=[
            pltpu.VMEM((C_in, pad_up + t_tile), x.dtype),   # rolling window (halo+tile)
            pltpu.VMEM((K * c8, t_tile), mxu_dtype),        # im2col slab
        ],
        compiler_params=pltpu.CompilerParams(
            dimension_semantics=("parallel", "arbitrary"),
            vmem_limit_bytes=vmem_limit),
        cost_estimate=cost,
    )(x, w_flat, b2)


# ---------------------------------------------------------------------------
# Reference + self-test
# ---------------------------------------------------------------------------

def _reference(x, weight, bias, dilation):
    """Pure-JAX reference matching the PyTorch module exactly (f32)."""
    K = weight.shape[-1]
    pad = (K - 1) * dilation
    y = jax.lax.conv_general_dilated(
        x, weight, window_strides=(1,), padding=[(pad, pad)],
        rhs_dilation=(dilation,), dimension_numbers=("NCH", "OIH", "NCH"))
    y = y + bias[None, :, None]
    if pad != 0:
        y = y[:, :, :-pad]
    return y


if __name__ == "__main__":
    def _run_case(idx, B, C_in, C_out, T, K, dilation, dtype=jnp.float32,
                  t_tile=None, rtol=1e-5, atol=1e-5):
        key = jax.random.fold_in(jax.random.PRNGKey(0), idx)
        kx, kw, kb = jax.random.split(key, 3)
        x = jax.random.normal(kx, (B, C_in, T), dtype=jnp.float32)
        bound = 1.0 / np.sqrt(C_in * K)           # nn.Conv1d default init bound
        weight = jax.random.uniform(kw, (C_out, C_in, K), jnp.float32, -bound, bound)
        bias = jax.random.uniform(kb, (C_out,), jnp.float32, -bound, bound)

        x_d = x.astype(dtype)
        w_d = weight.astype(dtype)
        b_d = bias.astype(dtype)

        out = jax.block_until_ready(
            causal_conv1d(x_d, w_d, b_d, dilation=dilation, t_tile=t_tile))
        ref = jax.block_until_ready(
            _reference(x_d.astype(jnp.float32), w_d.astype(jnp.float32),
                       b_d.astype(jnp.float32), dilation))
        assert out.shape == (B, C_out, T), out.shape
        np.testing.assert_allclose(np.asarray(out, dtype=np.float32),
                                   np.asarray(ref), rtol=rtol, atol=atol)

    # Module config (single short tile).
    _run_case(0, B=2, C_in=4, C_out=8, T=16, K=3, dilation=2)
    # Multi-tile with a non-divisible remainder tile (t_tile=256 -> 256 + 128).
    _run_case(1, B=2, C_in=4, C_out=8, T=384, K=3, dilation=2)
    # pad == 0 (K == 1): pointwise path, fully parallel grid.
    _run_case(2, B=2, C_in=4, C_out=8, T=16, K=1, dilation=1)
    # Rolling halo: pad = 160 > t_tile = 128 (deep-dilation WaveNet layers).
    _run_case(3, B=2, C_in=4, C_out=8, T=384, K=3, dilation=80, t_tile=128)
    # bf16 activations/weights (bf16 MXU operands, C_in already a sublane multiple).
    _run_case(4, B=2, C_in=8, C_out=16, T=640, K=3, dilation=2,
              dtype=jnp.bfloat16, rtol=2e-2, atol=2e-2)
    print("KERNEL_OK")
</pallas_src>

<mosaic_0001>
module attributes {stable_mosaic.version = 11 : i64} {
  func.func @_causal_conv1d_kernel(%arg0: i32, %arg1: i32, %arg2: memref<1x4x16xf32, #tpu.memory_space<vmem>>, %arg3: memref<8x24xf32, #tpu.memory_space<vmem>>, %arg4: memref<8x1xf32, #tpu.memory_space<vmem>>, %arg5: memref<1x8x16xf32, #tpu.memory_space<vmem>>, %arg6: memref<4x144xf32, #tpu.memory_space<vmem>>, %arg7: memref<24x16xf32, #tpu.memory_space<vmem>>) attributes {dimension_semantics = [#tpu.dimension_semantics<parallel>, #tpu.dimension_semantics<arbitrary>], iteration_bounds = array<i64: 2, 1>, scalar_prefetch = 0 : i64, scratch_operands = 2 : i64, tpu.core_type = #tpu.core_type<tc>, window_params = [{transform_indices = @transform_0, window_bounds = array<i64: 1, 4, 16>}, {pipeline_mode = #tpu.pipeline_mode<synchronous>, transform_indices = @transform_1, window_bounds = array<i64: 8, 24>}, {pipeline_mode = #tpu.pipeline_mode<synchronous>, transform_indices = @transform_2, window_bounds = array<i64: 8, 1>}, {transform_indices = @transform_3, window_bounds = array<i64: 1, 8, 16>}]} {
    %c0_i32 = arith.constant 0 : i32
    %0 = arith.cmpi eq, %arg1, %c0_i32 : i32
    %1 = arith.extui %0 : i1 to i32
    %c0_i32_0 = arith.constant 0 : i32
    %2 = arith.cmpi ne, %1, %c0_i32_0 : i32
    scf.if %2 {
      %cst_21 = arith.constant 0.000000e+00 : f32
      %21 = vector.broadcast %cst_21 : f32 to vector<4x128xf32>
      %c0_22 = arith.constant 0 : index
      %c0_23 = arith.constant 0 : index
      %22 = vector.load %arg6[%c0_22, %c0_23] : memref<4x144xf32, #tpu.memory_space<vmem>>, vector<4x128xf32>
      tpu.vector_store %arg6[%c0_22, %c0_23], %21 {strides = array<i32>} : memref<4x144xf32, #tpu.memory_space<vmem>>, vector<4x128xf32>,
      %cst_24 = arith.constant 0.000000e+00 : f32
      %23 = vector.broadcast %cst_24 : f32 to vector<24x16xf32>
      %c0_25 = arith.constant 0 : index
      %c0_26 = arith.constant 0 : index
      %24 = vector.load %arg7[%c0_25, %c0_26] : memref<24x16xf32, #tpu.memory_space<vmem>>, vector<24x16xf32>
      tpu.vector_store %arg7[%c0_25, %c0_26], %23 {strides = array<i32>} : memref<24x16xf32, #tpu.memory_space<vmem>>, vector<24x16xf32>,
    } else {
    }
    %c0 = arith.constant 0 : index
    %c0_1 = arith.constant 0 : index
    %c0_2 = arith.constant 0 : index
    %3 = vector.load %arg2[%c0, %c0_1, %c0_2] : memref<1x4x16xf32, #tpu.memory_space<vmem>>, vector<1x4x16xf32>
    %4 = vector.shape_cast %3 : vector<1x4x16xf32> to vector<4x16xf32>
    %c0_3 = arith.constant 0 : index
    %c128 = arith.constant 128 : index
    %5 = vector.load %arg6[%c0_3, %c128] : memref<4x144xf32, #tpu.memory_space<vmem>>, vector<4x16xf32>
    tpu.vector_store %arg6[%c0_3, %c128], %4 {strides = array<i32>} : memref<4x144xf32, #tpu.memory_space<vmem>>, vector<4x16xf32>,
    %c0_4 = arith.constant 0 : index
    %c124 = arith.constant 124 : index
    %6 = vector.load %arg6[%c0_4, %c124] : memref<4x144xf32, #tpu.memory_space<vmem>>, vector<4x16xf32>
    %c0_5 = arith.constant 0 : index
    %c0_6 = arith.constant 0 : index
    %7 = vector.load %arg7[%c0_5, %c0_6] : memref<24x16xf32, #tpu.memory_space<vmem>>, vector<4x16xf32>
    tpu.vector_store %arg7[%c0_5, %c0_6], %6 {strides = array<i32>} : memref<24x16xf32, #tpu.memory_space<vmem>>, vector<4x16xf32>,
    %c0_7 = arith.constant 0 : index
    %c126 = arith.constant 126 : index
    %8 = vector.load %arg6[%c0_7, %c126] : memref<4x144xf32, #tpu.memory_space<vmem>>, vector<4x16xf32>
    %c8 = arith.constant 8 : index
    %c0_8 = arith.constant 0 : index
    %9 = vector.load %arg7[%c8, %c0_8] : memref<24x16xf32, #tpu.memory_space<vmem>>, vector<4x16xf32>
    tpu.vector_store %arg7[%c8, %c0_8], %8 {strides = array<i32>} : memref<24x16xf32, #tpu.memory_space<vmem>>, vector<4x16xf32>,
    %c0_9 = arith.constant 0 : index
    %c128_10 = arith.constant 128 : index
    %10 = vector.load %arg6[%c0_9, %c128_10] : memref<4x144xf32, #tpu.memory_space<vmem>>, vector<4x16xf32>
    %c16 = arith.constant 16 : index
    %c0_11 = arith.constant 0 : index
    %11 = vector.load %arg7[%c16, %c0_11] : memref<24x16xf32, #tpu.memory_space<vmem>>, vector<4x16xf32>
    tpu.vector_store %arg7[%c16, %c0_11], %10 {strides = array<i32>} : memref<24x16xf32, #tpu.memory_space<vmem>>, vector<4x16xf32>,
    %c0_12 = arith.constant 0 : index
    %c0_13 = arith.constant 0 : index
    %12 = vector.load %arg3[%c0_12, %c0_13] : memref<8x24xf32, #tpu.memory_space<vmem>>, vector<8x24xf32>
    %c0_14 = arith.constant 0 : index
    %c0_15 = arith.constant 0 : index
    %13 = vector.load %arg7[%c0_14, %c0_15] : memref<24x16xf32, #tpu.memory_space<vmem>>, vector<24x16xf32>
    %cst = arith.constant dense<0.000000e+00> : vector<8x16xf32>
    %14 = tpu.matmul %12, %13, %cst {dimension_numbers = #tpu.dot_dimension_numbers<[1], [0], [0], [1], [0, 0, 1, 1], [], []>} : vector<8x24xf32>, vector<24x16xf32>, vector<8x16xf32> -> vector<8x16xf32>
    %c0_16 = arith.constant 0 : index
    %c0_17 = arith.constant 0 : index
    %15 = vector.load %arg4[%c0_16, %c0_17] : memref<8x1xf32, #tpu.memory_space<vmem>>, vector<8x1xf32>
    %16 = vector.broadcast %15 : vector<8x1xf32> to vector<8x16xf32>
    %17 = arith.addf %14, %16 : vector<8x16xf32>
    %c0_18 = arith.constant 0 : index
    %c0_19 = arith.constant 0 : index
    %c0_20 = arith.constant 0 : index
    %18 = vector.load %arg5[%c0_18, %c0_19, %c0_20] : memref<1x8x16xf32, #tpu.memory_space<vmem>>, vector<1x8x16xf32>
    %19 = vector.shape_cast %18 : vector<1x8x16xf32> to vector<8x16xf32>
    %20 = vector.shape_cast %17 : vector<8x16xf32> to vector<1x8x16xf32>
    tpu.vector_store %arg5[%c0_18, %c0_19, %c0_20], %20 {strides = array<i32>} : memref<1x8x16xf32, #tpu.memory_space<vmem>>, vector<1x8x16xf32>,
    return
  }
  func.func @transform_0(%arg0: i32, %arg1: i32) -> (i32, i32, i32) {
    %c0_i32 = arith.constant 0 : i32
    %c0_i32_0 = arith.constant 0 : i32
    return %arg0, %c0_i32, %arg1 : i32, i32, i32
  }
  func.func @transform_1(%arg0: i32, %arg1: i32) -> (i32, i32) {
    %c0_i32 = arith.constant 0 : i32
    %c0_i32_0 = arith.constant 0 : i32
    %c0_i32_1 = arith.constant 0 : i32
    return %c0_i32, %c0_i32_0 : i32, i32
  }
  func.func @transform_2(%arg0: i32, %arg1: i32) -> (i32, i32) {
    %c0_i32 = arith.constant 0 : i32
    %c0_i32_0 = arith.constant 0 : i32
    %c0_i32_1 = arith.constant 0 : i32
    return %c0_i32, %c0_i32_0 : i32, i32
  }
  func.func @transform_3(%arg0: i32, %arg1: i32) -> (i32, i32, i32) {
    %c0_i32 = arith.constant 0 : i32
    %c0_i32_0 = arith.constant 0 : i32
    return %arg0, %c0_i32, %arg1 : i32, i32, i32
  }
}

</mosaic_0001>

<llo_original>
// kernel: tpu_custom_call.1
$region0: #{tpu_custom_call.1}
  #allocation0 [shape = 'u32[]', space=smem, size = 0x4, offset = 0x4, fixed_abs, tag = 'smem constant byte address 0x4 - core index']
  #allocation1 [shape = 'u32[72,128]{1,0:T(1,128)}', space=vmem, size = 0x9000, scoped, tag = 'internal scratch']
  #allocation2 [shape = 'f32[4,144]{1,0:T(4,128)}', space=vmem, size = 0x1000, scoped, tag = 'scratch operand']
  #allocation3 [shape = 'f32[24,16]{1,0:T(8,128)}', space=vmem, size = 0x3000, scoped, tag = 'scratch operand']
  %s0 = inlined_call_operand.vmem [shape: f32[2,4,16], index: 0, kind: input, shape index: {}]
  %s1 = inlined_call_operand.hbm [shape: f32[8,24], index: 1, kind: input, shape index: {}]
  %s2 = inlined_call_operand.vmem [shape: f32[8,1], index: 2, kind: input, shape index: {}]
  %s3 = inlined_call_operand.hbm [shape: f32[2,8,16], index: 3, kind: output, shape index: {}]
  %s4 = sld [smem:[#allocation0]]
  $region53: #{tpu_custom_call.1} parent=0
    _
  %s6 = ssub.s32 1, %s4
  %s7 = scalar_select 0, %s6, %s4
  $region1: #{tpu_custom_call.1} parent=0
    #allocation4 [shape = 'u8[4096]{0}', space=vmem, size = 0x1000, scoped, tag = 'input window, operand 1, single buffered']
    #allocation5 [shape = 's32[2]{0}', space=sflag, size = 0x8, scoped, tag = 'scoped memory for tpu_custom_call.1']
    #allocation6 [shape = 's32[2]{0}', space=sflag, size = 0x8, scoped, tag = 'scoped memory for tpu_custom_call.1']
    #allocation7 [shape = 'u8[8192]{0}', space=vmem, size = 0x2000, scoped, tag = 'output window, operand 0']
    %8 = vsyncpa [#allocation5], 0
    %9 = vsyncpa [#allocation6], 0
    %s10 = scalar_lea.sflag [#allocation6], 1
    %11 = vsyncpa %s10, 0
    loop: start=0, step=1, limit=4
    $region2: #{tpu_custom_call.1} parent=1 // loop_pre_header
      _
    $region3: #{tpu_custom_call.1} parent=1 // loop_header
      %s13 = sphi 0, %s17
      %p14 = scmp.ge.s32.totalorder %s13, 4
      %s20 = sphi 0, %s32
      %s21 = sphi 0, %s28
      %s22 = sphi 0, %s20
      %s23 = sphi 0, %s21
      %s24 = sphi 0, %s22
      %s25 = sphi 0, %s23
      %s37 = sphi 0, %s39
      %s40 = sphi 0, %s37
      %s41 = sphi 0, %s40
      %s57 = sphi 0, %s41
      %s61 = sphi 0, %s61
      %s63 = sphi 0, %s61
      %s64 = sphi 0, %s63
      %s78 = sphi 0, %s64
      %s82 = sphi 0, %s82
      %s84 = sphi 0, %s82
      %s85 = sphi 0, %s84
      %s99 = sphi 0, %s85
      %s107 = sphi 0, %s109
      %s110 = sphi 0, %s107
      %s111 = sphi 0, %s110
      %s127 = sphi 0, %s111
    $region4: #{tpu_custom_call.1} parent=1 // loop_header_branch
      %16 = sbr.rel (%p14) target = $region8
    $region5: #{tpu_custom_call.1} parent=1 // loop_body
      %s18 = ssub.s32 %s13, 1
      %s19 = ssub.s32 %s13, 2
      %s26 = sadd.s32 1, %s21
      %p27 = scmp.ge.s32.totalorder %s26, 1
      %s28 = scalar_select %p27, 0, %s26
      %s29 = sadd.s32 1, %s20
      %s30 = scalar_select %p27, %s29, %s20
      %p31 = scmp.ge.s32.totalorder %s30, 2
      %s32 = scalar_select %p31, 0, %s30
      %s33 = ssub.s32 %s20, %s32
      %s34 = ssub.s32 %s21, %s28
      %s35 = sor.u32 %s33, %s34
      %p36 = scmp.eq.s32.totalorder %s35, 0
      %s38 = sadd.s32 %s37, 1
      %s39 = scalar_select %p36, %s37, %s38
      %p42 = pneg %p36
      %p43 = scmp.eq.s32.totalorder %s13, 1
      %p44 = por %p42, %p43
      %p45 = scmp.ne.s32.totalorder %s37, %s40
      %p46 = scmp.eq.s32.totalorder %s13, 0
      %p47 = por %p45, %p46
      %p48 = scmp.ne.s32.totalorder %s37, %s40
      %p49 = scmp.eq.s32.totalorder %s18, 1
      %p50 = por %p48, %p49
      %p51 = scmp.ne.s32.totalorder %s40, %s41
      %p52 = scmp.eq.s32.totalorder %s18, 0
      %p53 = por %p51, %p52
      %p54 = scmp.ne.s32.totalorder %s40, %s41
      %p55 = scmp.eq.s32.totalorder %s19, 1
      %p56 = por %p54, %p55
      %p58 = scmp.ne.s32.totalorder %s41, %s57
      %p59 = scmp.eq.s32.totalorder %s19, 0
      %p60 = por %p58, %p59
      %s62 = sadd.s32 %s61, 1
      %p65 = scmp.eq.s32.totalorder %s13, 1
      %p66 = scmp.ne.s32.totalorder %s61, %s63
      %p67 = scmp.eq.s32.totalorder %s13, 0
      %p68 = por %p66, %p67
      %p69 = scmp.ne.s32.totalorder %s61, %s63
      %p70 = scmp.eq.s32.totalorder %s18, 1
      %p71 = por %p69, %p70
      %p72 = scmp.ne.s32.totalorder %s63, %s64
      %p73 = scmp.eq.s32.totalorder %s18, 0
      %p74 = por %p72, %p73
      %p75 = scmp.ne.s32.totalorder %s63, %s64
      %p76 = scmp.eq.s32.totalorder %s19, 1
      %p77 = por %p75, %p76
      %p79 = scmp.ne.s32.totalorder %s64, %s78
      %p80 = scmp.eq.s32.totalorder %s19, 0
      %p81 = por %p79, %p80
      %s83 = sadd.s32 %s82, 1
      %p86 = scmp.eq.s32.totalorder %s13, 1
      %p87 = scmp.ne.s32.totalorder %s82, %s84
      %p88 = scmp.eq.s32.totalorder %s13, 0
      %p89 = por %p87, %p88
      %p90 = scmp.ne.s32.totalorder %s82, %s84
      %p91 = scmp.eq.s32.totalorder %s18, 1
      %p92 = por %p90, %p91
      %p93 = scmp.ne.s32.totalorder %s84, %s85
      %p94 = scmp.eq.s32.totalorder %s18, 0
      %p95 = por %p93, %p94
      %p96 = scmp.ne.s32.totalorder %s84, %s85
      %p97 = scmp.eq.s32.totalorder %s19, 1
      %p98 = por %p96, %p97
      %p100 = scmp.ne.s32.totalorder %s85, %s99
      %p101 = scmp.eq.s32.totalorder %s19, 0
      %p102 = por %p100, %p101
      %s103 = ssub.s32 %s20, %s32
      %s104 = ssub.s32 %s21, %s28
      %s105 = sor.u32 %s103, %s104
      %p106 = scmp.eq.s32.totalorder %s105, 0
      %s108 = sadd.s32 %s107, 1
      %s109 = scalar_select %p106, %s107, %s108
      %p112 = pneg %p106
      %p113 = scmp.eq.s32.totalorder %s13, 1
      %p114 = por %p112, %p113
      %p115 = scmp.ne.s32.totalorder %s107, %s110
      %p116 = scmp.eq.s32.totalorder %s13, 0
      %p117 = por %p115, %p116
      %p118 = scmp.ne.s32.totalorder %s107, %s110
      %p119 = scmp.eq.s32.totalorder %s18, 1
      %p120 = por %p118, %p119
      %p121 = scmp.ne.s32.totalorder %s110, %s111
      %p122 = scmp.eq.s32.totalorder %s18, 0
      %p123 = por %p121, %p122
      %p124 = scmp.ne.s32.totalorder %s110, %s111
      %p125 = scmp.eq.s32.totalorder %s19, 1
      %p126 = por %p124, %p125
      %p128 = scmp.ne.s32.totalorder %s111, %s127
      %p129 = scmp.eq.s32.totalorder %s19, 0
      %p130 = por %p128, %p129
      %p131 = scmp.le.s32.totalorder 1, %s13
      %p132 = scmp.lt.s32.totalorder %s13, 3
      %p133 = pnand %p131, %p132
      %p134 = pneg %p133
      // Predicated region
      $region9: #{tpu_custom_call.1} parent=5 // pred_check
        _
      $region10: #{tpu_custom_call.1} parent=5 // pred_check_branch
        %136 = sbr.rel (%p133) target = $region12
      $region11: #{tpu_custom_call.1} parent=5 // pred_region
        %s137 = ssub.s32 %s13, 1
        // Predicated region
        $region13: #{tpu_custom_call.1} parent=11 // pred_check
          %p138 = pneg %p74
        $region14: #{tpu_custom_call.1} parent=11 // pred_check_branch
          %140 = sbr.rel (%p138) target = $region16
        $region15: #{tpu_custom_call.1} parent=11 // pred_region
          %142 = vsyncadd [#allocation5], 0
          %s144 = sshll.u32 %s1, 4
          %s145 = int_to_ptr.hbm [resolvable:$true] %s144
          %s146 = sshll.u32 [#allocation4], 4
          %s147 = int_to_ptr.vmem [resolvable:$true] %s146
          %149 = dma.hbm_to_vmem [thread:$0]  %s145, 128, %s147, [#allocation5]
        $region16: #{tpu_custom_call.1} parent=11 // pred_fallthru
          _
        // Predicated region
        $region17: #{tpu_custom_call.1} parent=11 // pred_check
          %p150 = pneg %p95
        $region18: #{tpu_custom_call.1} parent=11 // pred_check_branch
          %152 = sbr.rel (%p150) target = $region20
        $region19: #{tpu_custom_call.1} parent=11 // pred_region
          _
        $region20: #{tpu_custom_call.1} parent=11 // pred_fallthru
          _
      $region12: #{tpu_custom_call.1} parent=5 // pred_fallthru
        _
      %p153 = scmp.lt.s32.totalorder %s13, 2
      // Predicated region
      $region21: #{tpu_custom_call.1} parent=5 // pred_check
        %p154 = pneg %p153
      $region22: #{tpu_custom_call.1} parent=5 // pred_check_branch
        %156 = sbr.rel (%p154) target = $region24
      $region23: #{tpu_custom_call.1} parent=5 // pred_region
        // Predicated region
        $region25: #{tpu_custom_call.1} parent=23 // pred_check
          %p157 = pneg %p47
        $region26: #{tpu_custom_call.1} parent=23 // pred_check_branch
          %159 = sbr.rel (%p157) target = $region28
        $region27: #{tpu_custom_call.1} parent=23 // pred_region
          %p160 = scmp.lt.s32.totalorder %s20, 1
          %s161 = scalar_select %p160, %s20, 1
          %p162 = scmp.lt.s32.totalorder %s21, 0
          %s163 = scalar_select %p162, %s21, 0
          %s164 = sadd.s32 %s163, %s161
          %s165 = smul.addr %s164, 4
          %s166 = scalar_lea.vmem %s0, %s165
        $region28: #{tpu_custom_call.1} parent=23 // pred_fallthru
          _
      $region24: #{tpu_custom_call.1} parent=5 // pred_fallthru
        _
      %p167 = scmp.le.s32.totalorder 1, %s13
      %p168 = scmp.lt.s32.totalorder %s13, 3
      %p169 = pnand %p167, %p168
      %p170 = pneg %p169
      // Predicated region
      $region29: #{tpu_custom_call.1} parent=5 // pred_check
        _
      $region30: #{tpu_custom_call.1} parent=5 // pred_check_branch
        %172 = sbr.rel (%p169) target = $region32
      $region31: #{tpu_custom_call.1} parent=5 // pred_region
        %s173 = ssub.s32 %s13, 1
        // Predicated region
        $region33: #{tpu_custom_call.1} parent=31 // pred_check
          %p174 = pneg %p74
        $region34: #{tpu_custom_call.1} parent=31 // pred_check_branch
          %176 = sbr.rel (%p174) target = $region36
        $region35: #{tpu_custom_call.1} parent=31 // pred_region
          %178 = dma.done [#allocation5], 128
        $region36: #{tpu_custom_call.1} parent=31 // pred_fallthru
          _
        %p179 = scmp.lt.s32.totalorder %s22, 1
        %s180 = scalar_select %p179, %s22, 1
        %p181 = scmp.lt.s32.totalorder %s23, 0
        %s182 = scalar_select %p181, %s23, 0
        %s183 = sadd.s32 %s182, %s180
        %s184 = smul.addr %s183, 4
        %s185 = scalar_lea.vmem %s0, %s184
        %p186 = pneg %p53
        %p187 = pneg %p50
        %p188 = pneg %p74
        %p189 = pneg %p71
        %p190 = pneg %p95
        %p191 = pneg %p92
        %p192 = pneg %p123
        %p193 = pneg %p120
        %s194 = sand.u32 %s110, 1
        %s195 = scalar_lea.sflag [#allocation6], %s194
        %s196 = sand.u32 %s110, 1
        %s197 = smul.addr %s196, 8
        %s198 = scalar_lea.vmem [#allocation7], %s197
        %p199 = scmp.lt.s32.totalorder %s22, 1
        %s200 = scalar_select %p199, %s22, 1
        %p201 = scmp.lt.s32.totalorder %s23, 0
        %s202 = scalar_select %p201, %s23, 0
        %s203 = sadd.s32 %s202, %s200
        %s204 = smul.addr %s203, 4
        %s205 = scalar_lea.vmem %s0, %s204
        %p206 = scmp.eq.s32.totalorder %s23, 0
        // Predicated region
        $region37: #{tpu_custom_call.1} parent=31 // pred_check
          %p207 = pneg %p206
        $region38: #{tpu_custom_call.1} parent=31 // pred_check_branch
          %209 = sbr.rel (%p207) target = $region40
        $region39: #{tpu_custom_call.1} parent=31 // pred_region
          %210 = vst [vmem:[#allocation2] sm:$0xf] 0.0
          %vm211 = vcmask 130048
          %212 = vst.msk [vmem:[#allocation3] sm:$0xff] %vm211, 0.0
          %213 = vst.msk [vmem:[#allocation3 + $0x8] sm:$0xff] %vm211, 0.0
          %214 = vst.msk [vmem:[#allocation3 + $0x10] sm:$0xff] %vm211, 0.0
        $region40: #{tpu_custom_call.1} parent=31 // pred_fallthru
          _
        %v215 = vld [vmem:[%s205] sm:$0xf]
        %vm216 = vcmask 125952
        %217 = vst.msk [vmem:[#allocation2 + $0x4] sm:$0xf] %vm216, %v215
        %v218 = vld [vmem:[#allocation2] sm:$0xff]
        %220 = vst [vmem:[#allocation1] ss:$2 sm:$0xff] %v218
        %v221 = vld.sshfl [vmem:[#allocation1] sm:$0xff pattern:$0x75316420]
        %v222 = vld.sshfl [vmem:[#allocation1 + $0x8] sm:$0xff pattern:$0x75316420]
        %223 = vrot.lane.b32.xlu0 %v221, 4
        %v224 = vpop.permute.xlu0 %223
        %225 = vrot.lane.b32.xlu0 %v222, 4
        %v226 = vpop.permute.xlu0 %225
        %vm227 = vcmask 31744
        %v228 = vsel %vm227, %v224, %v226
        %230 = vst.msk [vmem:[#allocation3] sm:$0xf] %vm216, %v228
        %v231 = vld [vmem:[#allocation2] sm:$0xff]
        %233 = vst [vmem:[#allocation1] ss:$2 sm:$0xff] %v231
        %v234 = vld.sshfl [vmem:[#allocation1] sm:$0xff pattern:$0x75316420]
        %v235 = vld.sshfl [vmem:[#allocation1 + $0x8] sm:$0xff pattern:$0x75316420]
        %236 = vrot.lane.b32.xlu0 %v234, 2
        %v237 = vpop.permute.xlu0 %236
        %238 = vrot.lane.b32.xlu0 %v235, 2
        %v239 = vpop.permute.xlu0 %238
        %vm240 = vcmask 15360
        %v241 = vsel %vm240, %v237, %v239
        %243 = vst.msk [vmem:[#allocation3 + $0x8] sm:$0xf] %vm216, %v241
        %v244 = vld [vmem:[#allocation2 + $0x4] sm:$0xf]
        %245 = vst.msk [vmem:[#allocation3 + $0x10] sm:$0xf] %vm216, %v244
        %v246 = vld [vmem:[#allocation4] sm:$0xff]
        %v247 = vld [vmem:[#allocation3] sm:$0xff]
        %v248 = vld [vmem:[#allocation3 + $0x8] sm:$0xff]
        %v249 = vld [vmem:[#allocation3 + $0x10] sm:$0xff]
        %v250 = vld [vmem:[%s2] sm:$0xff]
        %252 = vset.pattern.permute.xlu0 0
        %253 = vperm.xlu0 %252, %v250
        %v254 = vpop.permute.xlu0 %253
        %vm256 = vcmask 195584
        %v258 = vsel %vm256, %v246, 0
        %260 = vmatpush.msra.mxu0 0.0
        %261 = vmatpush.msra.mxu0 0.0
        %262 = vmatpush.msra.mxu0 0.0
        %263 = vmatpush.msra.mxu0 0.0
        %264 = vmatpush.msra.mxu0 0.0
        %265 = vmatpush.msra.mxu0 0.0
        %266 = vmatpush.msra.mxu0 0.0
        %267 = vmatpush.msra.mxu0 0.0
        %268 = vmatpush.msra.mxu0 0.0
        %269 = vmatpush.msra.mxu0 0.0
        %270 = vmatpush.msra.mxu0 0.0
        %271 = vmatpush.msra.mxu0 0.0
        %272 = vmatpush.msra.mxu0 0.0
        %273 = vmatpush.msra.mxu0 %v249
        %274 = vmatpush.msra.mxu0 %v248
        %275 = vmatpush.msra.mxu0 %v247
        %276 = vmatmul.f32.gmra.mxu0 %v258
        %v277 = vpop.f32.mrf.mxu0
        %v278 = vadd.f32 %v254, %v277
        %279 = vdwg.mxu0
        %vm280 = vcmask 130048
        %281 = vst.msk [vmem:[%s198] sm:$0xff] %vm280, %v278
        %s282 = sand.u32 %s110, 1
        %s283 = scalar_lea.sflag [#allocation6], %s282
        %s284 = sand.u32 %s110, 1
        %s285 = smul.addr %s284, 8
        %s286 = scalar_lea.vmem [#allocation7], %s285
        // Predicated region
        $region41: #{tpu_custom_call.1} parent=31 // pred_check
          %p287 = pneg %p120
        $region42: #{tpu_custom_call.1} parent=31 // pred_check_branch
          %289 = sbr.rel (%p287) target = $region44
        $region43: #{tpu_custom_call.1} parent=31 // pred_region
          %291 = vsyncadd %s283, 0
          %s292 = sadd.s32 %s23, %s22
          %s293 = smul.addr %s292, 8
          %s294 = scalar_lea.hbm %s3, %s293
          %s296 = sshll.u32 %s286, 4
          %s297 = int_to_ptr.vmem [resolvable:$true] %s296
          %s298 = sshll.u32 %s294, 4
          %s299 = int_to_ptr.hbm [resolvable:$true] %s298
          %301 = dma.vmem_to_hbm [thread:$0]  %s297, 128, %s299, %s283
        $region44: #{tpu_custom_call.1} parent=31 // pred_fallthru
          _
      $region32: #{tpu_custom_call.1} parent=5 // pred_fallthru
        _
      %p302 = scmp.le.s32.totalorder 2, %s13
      // Predicated region
      $region45: #{tpu_custom_call.1} parent=5 // pred_check
        %p303 = pneg %p302
      $region46: #{tpu_custom_call.1} parent=5 // pred_check_branch
        %305 = sbr.rel (%p303) target = $region48
      $region47: #{tpu_custom_call.1} parent=5 // pred_region
        %s306 = ssub.s32 %s13, 2
        // Predicated region
        $region49: #{tpu_custom_call.1} parent=47 // pred_check
          %p307 = pneg %p126
        $region50: #{tpu_custom_call.1} parent=47 // pred_check_branch
          %309 = sbr.rel (%p307) target = $region52
        $region51: #{tpu_custom_call.1} parent=47 // pred_region
          %s310 = sand.u32 %s111, 1
          %s311 = scalar_lea.sflag [#allocation6], %s310
          %s312 = sand.u32 %s111, 1
          %s313 = smul.addr %s312, 8
          %s314 = scalar_lea.vmem [#allocation7], %s313
          %316 = dma.done %s311, 128
        $region52: #{tpu_custom_call.1} parent=47 // pred_fallthru
          _
      $region48: #{tpu_custom_call.1} parent=5 // pred_fallthru
        _
    $region6: #{tpu_custom_call.1} parent=1 // loop_footer
      %s17 = sadd.s32 1, %s13
    $region7: #{tpu_custom_call.1} parent=1 // loop_footer_branch
      %12 = sbr.rel target = $region3
    $region8: #{tpu_custom_call.1} parent=1 // loop_exit
      _
    %317 = vsyncpa [#allocation5], 1
    %s318 = scalar_lea.sflag [#allocation5], 1
    %319 = vsyncpa %s318, 1
    %320 = vsyncpa [#allocation6], 1
    %s321 = scalar_lea.sflag [#allocation6], 1
    %322 = vsyncpa %s321, 1

</llo_original>
